<compile_context>
chip_gen: v7x
topology: tpu7x:2x2x1
jax: 0.10.0
libtpu: 0.0.40
codegen_flags: <defaults>
</compile_context>

<pallas_src>
import functools

import jax
import jax.numpy as jnp
from jax.experimental import pallas as pl
from jax.experimental.pallas import tpu as pltpu

# ---- vocabulary exactly as in the PyTorch script --------------------------
sentences = ['Kage is Teacher', 'Mazong is Boss', 'Niuzong is Boss',
             'Xiaobing is Student', 'Xiaoxue is Student']
words = ' '.join(sentences).split()
word_list = sorted(set(words))          # sorted for determinism
voc_size = len(word_list)               # 9
embedding_size = 2                      # classic toy W2V embedding dim

_SUBLANE = 8
_LANE = 128


def _round_up(n, m):
    return (n + m - 1) // m * m


def _pick_batch_tile(batch):
    """Batch tile: big enough to amortize per-step overhead, capped at 512 rows;
    keep >=2 tiles when the batch allows so the "parallel" grid axis can shard
    across both v7x TensorCores."""
    tb = min(512, _round_up(batch, _SUBLANE))
    if batch > 2 * _SUBLANE:
        tb = min(tb, _round_up((batch + 1) // 2, _SUBLANE))
    return tb


# ---------------------------------------------------------------------------
# Kernel 1: hidden (TB, E) @ w2 (E, V_pad) -> logits (TB, V_pad)
# ---------------------------------------------------------------------------
def _project_kernel(h_ref, w2_ref, out_ref, *, emb):
    h = h_ref[...]                           # (TB, E)    whole tile, one load
    w2 = w2_ref[...]                         # (E, V_pad) whole slab, one load
    if emb >= 64:
        # Real word2vec sizes (E ~ 100-300): contraction belongs on the MXU.
        out_ref[...] = jnp.dot(
            h, w2, preferred_element_type=jnp.float32).astype(out_ref.dtype)
    else:
        # Tiny E: expand as E full-(TB, V_pad) VPU FMAs (broadcast column x
        # broadcast row); one unmasked, lane-dense store for the whole tile.
        acc = h[:, 0:1] * w2[0:1, :]
        for e in range(1, emb):
            acc = acc + h[:, e:e + 1] * w2[e:e + 1, :]
        out_ref[...] = acc.astype(out_ref.dtype)


def _project(hidden_pad, w2_pad, tb):
    b_pad, emb = hidden_pad.shape
    _, v_pad = w2_pad.shape
    return pl.pallas_call(
        functools.partial(_project_kernel, emb=emb),
        out_shape=jax.ShapeDtypeStruct((b_pad, v_pad), jnp.float32),
        grid=(b_pad // tb,),
        in_specs=[
            pl.BlockSpec((tb, emb), lambda i: (i, 0)),
            # Grid-invariant slab; double-buffer waste is negligible at this
            # V_pad (single-buffer it at real vocab sizes).
            pl.BlockSpec((emb, v_pad), lambda i: (0, 0)),
        ],
        out_specs=pl.BlockSpec((tb, v_pad), lambda i: (i, 0)),
        compiler_params=pltpu.CompilerParams(
            dimension_semantics=("parallel",),
        ),
    )(hidden_pad, w2_pad)


@jax.jit
def skipgram_forward_ids(idx, w1, w2):
    """Logits for center-word ids (one-hot contract): out[b] = w1[idx[b]] @ w2."""
    (batch,) = idx.shape
    voc, emb = w1.shape
    assert w2.shape == (emb, voc)

    tb = _pick_batch_tile(batch)
    b_pad = _round_up(batch, tb)
    v_pad = _round_up(voc, _LANE)

    # First Linear: for one-hot rows X @ w1 == w1[idx] -- a row gather; the
    # (B, V) one-hot never touches HBM.  Pad rows with zeros -> zero logits.
    hidden = jnp.take(w1.astype(jnp.float32), idx, axis=0)            # (B, E)
    hidden_p = jnp.zeros((b_pad, emb), jnp.float32).at[:batch].set(hidden)
    w2_p = jnp.zeros((emb, v_pad), jnp.float32).at[:, :voc].set(w2)

    out_p = _project(hidden_p, w2_p, tb)
    return out_p[:batch, :voc]


# ---------------------------------------------------------------------------
# Kernel 2: exact dense forward for arbitrary X (both matmuls on the MXU)
# ---------------------------------------------------------------------------
def _dense_fwd_kernel(x_ref, w1_ref, w2_ref, out_ref):
    hidden = jnp.dot(x_ref[...], w1_ref[...], preferred_element_type=jnp.float32)
    out_ref[...] = jnp.dot(
        hidden, w2_ref[...], preferred_element_type=jnp.float32).astype(out_ref.dtype)


@jax.jit
def skipgram_forward(x, w1, w2):
    """Exact dense forward (arbitrary X): out = (x @ w1) @ w2."""
    batch, voc = x.shape
    emb = w1.shape[1]
    assert w1.shape == (voc, emb) and w2.shape == (emb, voc)

    tb = _pick_batch_tile(batch)
    b_pad = _round_up(batch, tb)
    v_pad = _round_up(voc, _LANE)
    e_pad = _round_up(emb, _LANE)

    # Zero-pad V and E to lane multiples so every block is (8,128)-aligned and
    # both matmuls hit the MXU with clean tiles; zero padding is exact.
    x_p = jnp.zeros((b_pad, v_pad), jnp.float32).at[:batch, :voc].set(
        x.astype(jnp.float32))
    w1_p = jnp.zeros((v_pad, e_pad), jnp.float32).at[:voc, :emb].set(w1)
    w2_p = jnp.zeros((e_pad, v_pad), jnp.float32).at[:emb, :voc].set(w2)

    out_p = pl.pallas_call(
        _dense_fwd_kernel,
        out_shape=jax.ShapeDtypeStruct((b_pad, v_pad), jnp.float32),
        grid=(b_pad // tb,),
        in_specs=[
            pl.BlockSpec((tb, v_pad), lambda i: (i, 0)),
            pl.BlockSpec((v_pad, e_pad), lambda i: (0, 0)),
            pl.BlockSpec((e_pad, v_pad), lambda i: (0, 0)),
        ],
        out_specs=pl.BlockSpec((tb, v_pad), lambda i: (i, 0)),
        compiler_params=pltpu.CompilerParams(
            dimension_semantics=("parallel",),
        ),
    )(x_p, w1_p, w2_p)
    return out_p[:batch, :voc]


if __name__ == "__main__":
    key = jax.random.PRNGKey(0)
    k_w1, k_w2, k_idx = jax.random.split(key, 3)

    B = 2  # small batch of (center-word) one-hot vectors

    # Deterministic parameter init (torch.nn.Linear shapes, stored transposed):
    #   input_to_hidden.weight  : (E, V) -> w1 = weight.T : (V, E)
    #   hidden_to_output.weight : (V, E) -> w2 = weight.T : (E, V)
    bound1 = 1.0 / jnp.sqrt(voc_size)
    bound2 = 1.0 / jnp.sqrt(embedding_size)
    w1 = jax.random.uniform(k_w1, (voc_size, embedding_size),
                            minval=-bound1, maxval=bound1, dtype=jnp.float32)
    w2 = jax.random.uniform(k_w2, (embedding_size, voc_size),
                            minval=-bound2, maxval=bound2, dtype=jnp.float32)

    # One-hot inputs, as the SkipGram training loop would feed.
    idx = jax.random.randint(k_idx, (B,), 0, voc_size)
    x = jax.nn.one_hot(idx, voc_size, dtype=jnp.float32)

    # Reference: the original module's forward in plain JAX.
    ref = (x @ w1) @ w2

    out_ids = jax.block_until_ready(skipgram_forward_ids(idx, w1, w2))
    out_dense = jax.block_until_ready(skipgram_forward(x, w1, w2))

    assert out_ids.shape == (B, voc_size)
    assert out_dense.shape == (B, voc_size)
    assert jnp.allclose(out_ids, ref, atol=1e-5, rtol=1e-5)
    assert jnp.allclose(out_dense, ref, atol=1e-5, rtol=1e-5)

    print("KERNEL_OK")
</pallas_src>

<mosaic_0001>
module attributes {stable_mosaic.version = 11 : i64} {
  func.func @_project_kernel(%arg0: i32, %arg1: memref<8x2xf32, #tpu.memory_space<vmem>>, %arg2: memref<2x128xf32, #tpu.memory_space<vmem>>, %arg3: memref<8x128xf32, #tpu.memory_space<vmem>>) attributes {dimension_semantics = [#tpu.dimension_semantics<parallel>], iteration_bounds = array<i64: 1>, scalar_prefetch = 0 : i64, scratch_operands = 0 : i64, tpu.core_type = #tpu.core_type<tc>, window_params = [{transform_indices = @transform_0, window_bounds = array<i64: 8, 2>}, {pipeline_mode = #tpu.pipeline_mode<synchronous>, transform_indices = @transform_1, window_bounds = array<i64: 2, 128>}, {transform_indices = @transform_2, window_bounds = array<i64: 8, 128>}]} {
    %c0 = arith.constant 0 : index
    %c0_0 = arith.constant 0 : index
    %0 = vector.load %arg1[%c0, %c0_0] : memref<8x2xf32, #tpu.memory_space<vmem>>, vector<8x2xf32>
    %c0_1 = arith.constant 0 : index
    %c0_2 = arith.constant 0 : index
    %1 = vector.load %arg2[%c0_1, %c0_2] : memref<2x128xf32, #tpu.memory_space<vmem>>, vector<2x128xf32>
    %2 = vector.extract_strided_slice %0 {offsets = [0, 0], sizes = [8, 1], strides = [1, 1]} : vector<8x2xf32> to vector<8x1xf32>
    %3 = vector.extract_strided_slice %1 {offsets = [0, 0], sizes = [1, 128], strides = [1, 1]} : vector<2x128xf32> to vector<1x128xf32>
    %4 = vector.broadcast %2 : vector<8x1xf32> to vector<8x128xf32>
    %5 = vector.broadcast %3 : vector<1x128xf32> to vector<8x128xf32>
    %6 = arith.mulf %4, %5 : vector<8x128xf32>
    %7 = vector.extract_strided_slice %0 {offsets = [0, 1], sizes = [8, 1], strides = [1, 1]} : vector<8x2xf32> to vector<8x1xf32>
    %8 = vector.extract_strided_slice %1 {offsets = [1, 0], sizes = [1, 128], strides = [1, 1]} : vector<2x128xf32> to vector<1x128xf32>
    %9 = vector.broadcast %7 : vector<8x1xf32> to vector<8x128xf32>
    %10 = vector.broadcast %8 : vector<1x128xf32> to vector<8x128xf32>
    %11 = arith.mulf %9, %10 : vector<8x128xf32>
    %12 = arith.addf %6, %11 : vector<8x128xf32>
    %c0_3 = arith.constant 0 : index
    %c0_4 = arith.constant 0 : index
    %13 = vector.load %arg3[%c0_3, %c0_4] : memref<8x128xf32, #tpu.memory_space<vmem>>, vector<8x128xf32>
    tpu.vector_store %arg3[%c0_3, %c0_4], %12 {strides = array<i32>} : memref<8x128xf32, #tpu.memory_space<vmem>>, vector<8x128xf32>,
    return
  }
  func.func @transform_0(%arg0: i32) -> (i32, i32) {
    %c0_i32 = arith.constant 0 : i32
    %c0_i32_0 = arith.constant 0 : i32
    return %arg0, %c0_i32 : i32, i32
  }
  func.func @transform_1(%arg0: i32) -> (i32, i32) {
    %c0_i32 = arith.constant 0 : i32
    %c0_i32_0 = arith.constant 0 : i32
    %c0_i32_1 = arith.constant 0 : i32
    return %c0_i32, %c0_i32_0 : i32, i32
  }
  func.func @transform_2(%arg0: i32) -> (i32, i32) {
    %c0_i32 = arith.constant 0 : i32
    %c0_i32_0 = arith.constant 0 : i32
    return %arg0, %c0_i32 : i32, i32
  }
}

</mosaic_0001>

<llo_original>
// kernel: skipgram_forward_ids.1
$region0: #{skipgram_forward_ids.1}
  #allocation0 [shape = 'u32[]', space=smem, size = 0x4, offset = 0x4, fixed_abs, tag = 'smem constant byte address 0x4 - core index']
  #allocation1 [shape = 'u32[144,128]{1,0:T(1,128)}', space=vmem, size = 0x12000, scoped, tag = 'internal scratch']
  %s0 = inlined_call_operand.vmem [shape: f32[8,2], index: 0, kind: input, shape index: {}]
  %s1 = inlined_call_operand.vmem [shape: f32[2,128], index: 1, kind: input, shape index: {}]
  %s2 = inlined_call_operand.vmem [shape: f32[8,128], index: 2, kind: output, shape index: {}]
  %s3 = sld [smem:[#allocation0]]
  $region18: #{skipgram_forward_ids.1} parent=0
    _
  %s5 = ssub.s32 1, %s3
  %s6 = scalar_select 0, %s5, %s3
  // Predicated region
  $region2: #{skipgram_forward_ids.1} parent=0 // pred_check
    _
  $region3: #{skipgram_forward_ids.1} parent=0 // pred_check_branch
    %8 = sbr.rel (0) target = $region5
  $region4: #{skipgram_forward_ids.1} parent=0 // pred_region
    _
  $region5: #{skipgram_forward_ids.1} parent=0 // pred_fallthru
    _
  // Predicated region
  $region6: #{skipgram_forward_ids.1} parent=0 // pred_check
    _
  $region7: #{skipgram_forward_ids.1} parent=0 // pred_check_branch
    %10 = sbr.rel (0) target = $region9
  $region8: #{skipgram_forward_ids.1} parent=0 // pred_region
    _
  $region9: #{skipgram_forward_ids.1} parent=0 // pred_fallthru
    _
  %v11 = vld [vmem:[%s0] sm:$0xff]
  %v12 = vld [vmem:[%s1] sm:$0x3]
  %14 = vset.pattern.permute.xlu0 0
  %15 = vperm.xlu0 %14, %v11
  %v16 = vpop.permute.xlu0 %15
  %v18 = vlaneseq
  %v19 = vshrl.u32 %v18, 7
  %v20 = vsub.s32 0, %v19
  %v21 = vrot.slane %v12, %v20
  %v22 = vmul.f32 %v16, %v21
  %23 = vset.pattern.permute.xlu0 1
  %24 = vperm.xlu0 %23, %v11
  %v25 = vpop.permute.xlu0 %24
  %v27 = vlaneseq
  %v28 = vshrl.u32 %v27, 7
  %v29 = vsub.s32 1, %v28
  %v30 = vrot.slane %v12, %v29
  %v31 = vmul.f32 %v25, %v30
  %v32 = vadd.f32 %v22, %v31
  %33 = vst [vmem:[%s2] sm:$0xff] %v32
  // Predicated region
  $region10: #{skipgram_forward_ids.1} parent=0 // pred_check
    _
  $region11: #{skipgram_forward_ids.1} parent=0 // pred_check_branch
    %35 = sbr.rel (0) target = $region13
  $region12: #{skipgram_forward_ids.1} parent=0 // pred_region
    _
  $region13: #{skipgram_forward_ids.1} parent=0 // pred_fallthru
    _
  // Predicated region
  $region14: #{skipgram_forward_ids.1} parent=0 // pred_check
    _
  $region15: #{skipgram_forward_ids.1} parent=0 // pred_check_branch
    %37 = sbr.rel (0) target = $region17
  $region16: #{skipgram_forward_ids.1} parent=0 // pred_region
    _
  $region17: #{skipgram_forward_ids.1} parent=0 // pred_fallthru
    _

</llo_original>
